<compile_context>
chip_gen: v7x
topology: tpu7x:2x2x1
jax: 0.10.0
libtpu: 0.0.40
codegen_flags: <defaults>
</compile_context>

<pallas_src>
import functools

import numpy as np
import jax
import jax.numpy as jnp
from jax.experimental import pallas as pl
from jax.experimental.pallas import tpu as pltpu


_M_QUANTUM = 16                      # bf16 sublane packing (also a multiple of f32's 8)
_RESIDENT_FRACTION = 0.40            # weight bytes must fit in this fraction of VMEM
_DEFAULT_VMEM = 64 * 1024 * 1024     # conservative per-core default (v7x: 64 MiB/TC)


# ----------------------------- small static helpers -----------------------------

def _round_up(x, m):
    return ((x + m - 1) // m) * m


def _pick_tile(padded_dim, cap, quantum):
    """Largest multiple of `quantum` that divides `padded_dim` and is <= cap."""
    best = quantum
    t = quantum
    limit = min(cap, padded_dim)
    while t <= limit:
        if padded_dim % t == 0:
            best = t
        t += quantum
    return best


def _pick_mxu_tile(padded_dim, cap):
    """Prefer 256-aligned tiles (v6e/v7x 256x256 MXU); fall back to 128."""
    for q in (256, 128):
        if cap >= q and padded_dim % q == 0:
            return _pick_tile(padded_dim, cap, q)
    return min(padded_dim, cap)


def _vmem_capacity_bytes():
    try:
        cap = int(getattr(pltpu.get_tpu_info(), "vmem_capacity_bytes", _DEFAULT_VMEM))
        return cap if cap > 0 else _DEFAULT_VMEM
    except Exception:
        return _DEFAULT_VMEM


def _weight_fits_vmem(k, n_pad, itemsize):
    return k * n_pad * itemsize <= int(_RESIDENT_FRACTION * _vmem_capacity_bytes())


def _choose_m_tiling(m, tm_cap=256):
    """Minimal M padding (quantum 16) + largest dividing tile; prefer >= 2 M tiles."""
    m_pad = _round_up(m, _M_QUANTUM)
    tm = _pick_tile(m_pad, tm_cap, _M_QUANTUM)
    if m_pad // tm < 2:
        # v7x shards 'parallel' grid axes over its 2 TensorCores: expose >= 2 steps
        # whenever M allows it.
        half = _pick_tile(m_pad, max(_M_QUANTUM, m_pad // 2), _M_QUANTUM)
        if m_pad // half >= 2:
            tm = half
    return m_pad, tm


# ----------------------------------- kernels ------------------------------------

def _fc_kernel_resident(x_ref, w_ref, o_ref):
    # x_ref: (tm, K) activation tile in the caller's dtype (cast here, in VMEM, so no
    #        separate HBM pad/cast pass over x is needed).
    # w_ref: (K, N_pad) full weight, VMEM-resident for the whole call (DMA'd once).
    # o_ref: (tm, N_pad) output tile in the caller's dtype.
    o_ref[...] = jnp.dot(
        x_ref[...].astype(w_ref.dtype), w_ref[...],
        preferred_element_type=jnp.float32,
    ).astype(o_ref.dtype)


def _fc_kernel_tiled_f32out(x_ref, w_ref, o_ref):
    # f32 output block is k-invariant => already VMEM-resident; accumulate in place.
    @pl.when(pl.program_id(2) == 0)
    def _():
        o_ref[...] = jnp.zeros_like(o_ref)

    o_ref[...] += jnp.dot(
        x_ref[...].astype(w_ref.dtype), w_ref[...],
        preferred_element_type=jnp.float32,
    )


def _fc_kernel_tiled_acc(x_ref, w_ref, o_ref, acc_ref):
    # Non-f32 outputs: fp32 VMEM accumulator, init/finalize over the trailing k axis.
    @pl.when(pl.program_id(2) == 0)
    def _():
        acc_ref[...] = jnp.zeros_like(acc_ref)

    acc_ref[...] += jnp.dot(
        x_ref[...].astype(w_ref.dtype), w_ref[...],
        preferred_element_type=jnp.float32,
    )

    @pl.when(pl.program_id(2) == pl.num_programs(2) - 1)
    def _():
        o_ref[...] = acc_ref[...].astype(o_ref.dtype)


# ------------------------------ weight preparation -------------------------------

def prepare_fc_weight(weight, compute_dtype=jnp.bfloat16, force_tiled=False):
    """One-time weight prep (hoisted out of the per-call forward path).

    [out_size, in_size] -> transposed [K, N_pad] in the MXU compute dtype, with
    N (out_size) zero-padded to a multiple of 128 (lane-dense stores / MXU-aligned).
    K (in_size) is left unpadded when the whole weight will live resident in VMEM
    (the common case); it is only padded to a multiple of 128 when the large-weight
    tiled-reduction path will be used (or `force_tiled=True`).

    NOTE: compute_dtype=bf16 changes numerics vs an fp32 nn.Linear (exact for binary
    spike inputs, a small precision change otherwise); pass compute_dtype=jnp.float32
    to keep full precision.
    """
    out_size, in_size = weight.shape
    n_pad = _round_up(out_size, 128)
    itemsize = np.dtype(compute_dtype).itemsize
    resident = _weight_fits_vmem(in_size, n_pad, itemsize) and not force_tiled
    k_dim = in_size if resident else _round_up(in_size, 128)
    wt = weight.T.astype(compute_dtype)
    return jnp.pad(wt, ((0, k_dim - in_size), (0, n_pad - out_size)))


def _weight_resident_spec(k_dim, n_pad):
    """Constant-index weight BlockSpec for the resident path (weight DMA'd once).

    pl.Buffered(1) keeps a single VMEM copy of the weight; if this JAX version does
    not support pipeline_mode, fall back to the default spec (still DMA'd only once,
    since the block index never changes), which just reserves 2x weight VMEM."""
    try:
        return pl.BlockSpec((k_dim, n_pad), lambda i: (0, 0),
                            pipeline_mode=pl.Buffered(1)), 1
    except Exception:
        return pl.BlockSpec((k_dim, n_pad), lambda i: (0, 0)), 2


# ----------------------------------- forward ------------------------------------

@functools.partial(jax.jit, static_argnames=("out_size",))
def spiking_fc_forward(x, wt_prepped, out_size):
    """y = x @ W^T with W pre-transposed/padded/cast by prepare_fc_weight().

    x          : [..., in_size]       (cast to the weight's compute dtype inside the
                                       kernel — no extra HBM pass over x)
    wt_prepped : [K or K_pad, N_pad]  (from prepare_fc_weight)
    returns    : [..., out_size] in x.dtype
    """
    in_size = x.shape[-1]
    lead_shape = x.shape[:-1]
    k_w, n_pad = wt_prepped.shape
    w_itemsize = np.dtype(wt_prepped.dtype).itemsize
    x_itemsize = np.dtype(x.dtype).itemsize
    out_dtype = x.dtype
    out_itemsize = np.dtype(out_dtype).itemsize
    cap = _vmem_capacity_bytes()

    x2d = x.reshape(-1, in_size)
    m = x2d.shape[0]
    m_pad, tm = _choose_m_tiling(m)

    resident = (k_w == in_size) and _weight_fits_vmem(in_size, n_pad, w_itemsize)

    if resident:
        # ---- fast path: whole weight resident in VMEM, 1-D grid over M ----
        w_spec, w_bufs = _weight_resident_spec(k_w, n_pad)

        def footprint(tm_):
            return (w_bufs * k_w * n_pad * w_itemsize      # weight (Buffered(1) => 1x)
                    + 2 * tm_ * k_w * x_itemsize            # double-buffered x tiles
                    + 2 * tm_ * n_pad * out_itemsize)       # double-buffered out tiles

        if footprint(tm) > int(0.75 * cap):
            tm = _M_QUANTUM                                  # shrink M tile if needed

        if m_pad != m:
            x2d = jnp.pad(x2d, ((0, m_pad - m), (0, 0)))

        grid = (m_pad // tm,)
        vmem_limit = int(min(0.9 * cap, max(16 << 20, footprint(tm) + (8 << 20))))

        y_pad = pl.pallas_call(
            _fc_kernel_resident,
            out_shape=jax.ShapeDtypeStruct((m_pad, n_pad), out_dtype),
            grid_spec=pltpu.PrefetchScalarGridSpec(
                num_scalar_prefetch=0,
                grid=grid,
                in_specs=[
                    pl.BlockSpec((tm, in_size), lambda i: (i, 0)),
                    w_spec,
                ],
                out_specs=pl.BlockSpec((tm, n_pad), lambda i: (i, 0)),
            ),
            compiler_params=pltpu.CompilerParams(
                dimension_semantics=("parallel",),
                vmem_limit_bytes=vmem_limit,
            ),
        )(x2d, wt_prepped)

    else:
        # ---- large-weight fallback: 3-D tiled GEMM, reduction axis last ----
        k_pad = k_w
        tk = _pick_mxu_tile(k_pad, 512)
        tn = _pick_mxu_tile(n_pad, 512)

        pad_m = m_pad - m
        pad_k = k_pad - in_size
        if pad_m or pad_k:
            x2d = jnp.pad(x2d, ((0, pad_m), (0, pad_k)))

        grid = (m_pad // tm, n_pad // tn, k_pad // tk)
        f32_out = np.dtype(out_dtype) == np.dtype(np.float32)
        kernel = _fc_kernel_tiled_f32out if f32_out else _fc_kernel_tiled_acc
        scratch = [] if f32_out else [pltpu.VMEM((tm, tn), jnp.float32)]

        footprint = (2 * tm * tk * x_itemsize + 2 * tk * tn * w_itemsize
                     + 2 * tm * tn * out_itemsize + (0 if f32_out else tm * tn * 4))
        vmem_limit = int(min(0.9 * cap, max(16 << 20, footprint + (8 << 20))))

        y_pad = pl.pallas_call(
            kernel,
            out_shape=jax.ShapeDtypeStruct((m_pad, n_pad), out_dtype),
            grid_spec=pltpu.PrefetchScalarGridSpec(
                num_scalar_prefetch=0,
                grid=grid,
                in_specs=[
                    pl.BlockSpec((tm, tk), lambda i, j, k: (i, k)),
                    pl.BlockSpec((tk, tn), lambda i, j, k: (k, j)),
                ],
                out_specs=pl.BlockSpec((tm, tn), lambda i, j, k: (i, j)),
                scratch_shapes=scratch,
            ),
            compiler_params=pltpu.CompilerParams(
                dimension_semantics=("parallel", "parallel", "arbitrary"),
                vmem_limit_bytes=vmem_limit,
            ),
        )(x2d, wt_prepped)

    # Drop padding, restore leading dims.
    return y_pad[:m, :out_size].reshape(*lead_shape, out_size)


# ------------------------------------- demo -------------------------------------

if __name__ == "__main__":
    # Small shapes consistent with the module: [batch] x ... x [in_size]
    batch, seq, in_size, out_size = 2, 8, 32, 64

    key = jax.random.PRNGKey(0)
    kx, kw = jax.random.split(key)

    x = jax.random.normal(kx, (batch, seq, in_size), dtype=jnp.float32)

    # Deterministic weight init (Kaiming-uniform-like, as nn.Linear would do).
    bound = 1.0 / float(np.sqrt(in_size))
    weight = jax.random.uniform(
        kw, (out_size, in_size), dtype=jnp.float32, minval=-bound, maxval=bound
    )

    # Pure-JAX reference of the forward pass (y = x @ W^T).
    y_ref = jnp.einsum("bsi,oi->bso", x, weight)

    # Fast path: weight resident in VMEM for the whole call.
    wt_resident = prepare_fc_weight(weight)
    y = jax.block_until_ready(spiking_fc_forward(x, wt_resident, out_size))
    assert y.shape == (batch, seq, out_size)
    # Tolerance loosened because operands are bf16 on the MXU (fp32 accumulation).
    assert jnp.allclose(y, y_ref, atol=2e-2, rtol=2e-2), float(
        jnp.max(jnp.abs(y - y_ref))
    )

    # Large-weight fallback path (forced at toy size just to exercise the tiled kernel).
    wt_tiled = prepare_fc_weight(weight, force_tiled=True)
    y2 = jax.block_until_ready(spiking_fc_forward(x, wt_tiled, out_size))
    assert y2.shape == (batch, seq, out_size)
    assert jnp.allclose(y2, y_ref, atol=2e-2, rtol=2e-2), float(
        jnp.max(jnp.abs(y2 - y_ref))
    )

    print("KERNEL_OK")
</pallas_src>

<mosaic_0001>
module attributes {stable_mosaic.version = 11 : i64} {
  func.func @_fc_kernel_resident(%arg0: i32, %arg1: memref<16x32xf32, #tpu.memory_space<vmem>>, %arg2: memref<32x128xbf16, #tpu.memory_space<vmem>>, %arg3: memref<16x128xf32, #tpu.memory_space<vmem>>) attributes {dimension_semantics = [#tpu.dimension_semantics<parallel>], iteration_bounds = array<i64: 1>, scalar_prefetch = 0 : i64, scratch_operands = 0 : i64, tpu.core_type = #tpu.core_type<tc>, window_params = [{transform_indices = @transform_0, window_bounds = array<i64: 16, 32>}, {pipeline_mode = #tpu.pipeline_mode<synchronous>, transform_indices = @transform_1, window_bounds = array<i64: 32, 128>}, {transform_indices = @transform_2, window_bounds = array<i64: 16, 128>}]} {
    %c0 = arith.constant 0 : index
    %c0_0 = arith.constant 0 : index
    %0 = vector.load %arg1[%c0, %c0_0] : memref<16x32xf32, #tpu.memory_space<vmem>>, vector<16x32xf32>
    %1 = arith.truncf %0 : vector<16x32xf32> to vector<16x32xbf16>
    %c0_1 = arith.constant 0 : index
    %c0_2 = arith.constant 0 : index
    %2 = vector.load %arg2[%c0_1, %c0_2] : memref<32x128xbf16, #tpu.memory_space<vmem>>, vector<32x128xbf16>
    %cst = arith.constant dense<0.000000e+00> : vector<16x128xf32>
    %3 = tpu.matmul %1, %2, %cst {dimension_numbers = #tpu.dot_dimension_numbers<[1], [0], [0], [1], [0, 0, 1, 1], [], []>} : vector<16x32xbf16>, vector<32x128xbf16>, vector<16x128xf32> -> vector<16x128xf32>
    %c0_3 = arith.constant 0 : index
    %c0_4 = arith.constant 0 : index
    %4 = vector.load %arg3[%c0_3, %c0_4] : memref<16x128xf32, #tpu.memory_space<vmem>>, vector<16x128xf32>
    tpu.vector_store %arg3[%c0_3, %c0_4], %3 {strides = array<i32>} : memref<16x128xf32, #tpu.memory_space<vmem>>, vector<16x128xf32>,
    return
  }
  func.func @transform_0(%arg0: i32) -> (i32, i32) {
    %c0_i32 = arith.constant 0 : i32
    %c0_i32_0 = arith.constant 0 : i32
    return %arg0, %c0_i32 : i32, i32
  }
  func.func @transform_1(%arg0: i32) -> (i32, i32) {
    %c0_i32 = arith.constant 0 : i32
    %c0_i32_0 = arith.constant 0 : i32
    %c0_i32_1 = arith.constant 0 : i32
    return %c0_i32, %c0_i32_0 : i32, i32
  }
  func.func @transform_2(%arg0: i32) -> (i32, i32) {
    %c0_i32 = arith.constant 0 : i32
    %c0_i32_0 = arith.constant 0 : i32
    return %arg0, %c0_i32 : i32, i32
  }
}

</mosaic_0001>

<llo_original>
// kernel: spiking_fc_forward.1
$region0: #{spiking_fc_forward.1}
  #allocation0 [shape = 'u32[]', space=smem, size = 0x4, offset = 0x4, fixed_abs, tag = 'smem constant byte address 0x4 - core index']
  #allocation1 [shape = 'u32[144,128]{1,0:T(1,128)}', space=vmem, size = 0x12000, scoped, tag = 'internal scratch']
  %s0 = inlined_call_operand.hbm [shape: f32[16,32], index: 0, kind: input, shape index: {}]
  %s1 = inlined_call_operand.hbm [shape: bf16[32,128], index: 1, kind: input, shape index: {}]
  %s2 = inlined_call_operand.vmem [shape: f32[16,128], index: 2, kind: output, shape index: {}]
  %s3 = sld [smem:[#allocation0]]
  $region26: #{spiking_fc_forward.1} parent=0
    _
  %s5 = ssub.s32 1, %s3
  %s6 = scalar_select 0, %s5, %s3
  $region1: #{spiking_fc_forward.1} parent=0
    #allocation2 [shape = 'u8[8192]{0}', space=vmem, size = 0x2000, scoped, tag = 'input window, operand 0, single buffered']
    #allocation3 [shape = 's32[1]{0}', space=sflag, size = 0x4, scoped, tag = 'scoped memory for spiking_fc_forward.1']
    #allocation4 [shape = 'u8[8192]{0}', space=vmem, size = 0x2000, scoped, tag = 'input window, operand 1, single buffered']
    #allocation5 [shape = 's32[1]{0}', space=sflag, size = 0x4, scoped, tag = 'scoped memory for spiking_fc_forward.1']
    %7 = vsyncpa [#allocation3], 0
    %8 = vsyncpa [#allocation5], 0
    // Predicated region
    $region2: #{spiking_fc_forward.1} parent=1 // pred_check
      _
    $region3: #{spiking_fc_forward.1} parent=1 // pred_check_branch
      %10 = sbr.rel (0) target = $region5
    $region4: #{spiking_fc_forward.1} parent=1 // pred_region
      %s12 = ssub.s32 256, 256
      %13 = vsyncadd [#allocation3], %s12
      %s14 = sshll.u32 [#allocation2], 4
      %s15 = int_to_ptr.vmem [resolvable:$true] %s14
      %20 = dma.hbm_to_vmem [thread:$0]  %s0, 256, %s15, [#allocation3], 128, 128, 8
    $region5: #{spiking_fc_forward.1} parent=1 // pred_fallthru
      _
    // Predicated region
    $region6: #{spiking_fc_forward.1} parent=1 // pred_check
      _
    $region7: #{spiking_fc_forward.1} parent=1 // pred_check_branch
      %22 = sbr.rel (0) target = $region9
    $region8: #{spiking_fc_forward.1} parent=1 // pred_region
      %s24 = ssub.s32 256, 256
      %25 = vsyncadd [#allocation5], %s24
      %s26 = sshll.u32 [#allocation4], 4
      %s27 = int_to_ptr.vmem [resolvable:$true] %s26
      %32 = dma.hbm_to_vmem [thread:$0]  %s1, 256, %s27, [#allocation5], 64, 64, 4
    $region9: #{spiking_fc_forward.1} parent=1 // pred_fallthru
      _
    // Predicated region
    $region10: #{spiking_fc_forward.1} parent=1 // pred_check
      _
    $region11: #{spiking_fc_forward.1} parent=1 // pred_check_branch
      %34 = sbr.rel (0) target = $region13
    $region12: #{spiking_fc_forward.1} parent=1 // pred_region
      %35 = dma.done [#allocation3], 256
    $region13: #{spiking_fc_forward.1} parent=1 // pred_fallthru
      _
    // Predicated region
    $region14: #{spiking_fc_forward.1} parent=1 // pred_check
      _
    $region15: #{spiking_fc_forward.1} parent=1 // pred_check_branch
      %37 = sbr.rel (0) target = $region17
    $region16: #{spiking_fc_forward.1} parent=1 // pred_region
      %38 = dma.done [#allocation5], 256
    $region17: #{spiking_fc_forward.1} parent=1 // pred_fallthru
      _
    %v40 = vld [vmem:[#allocation2] sm:$0xff]
    %v41 = vld [vmem:[#allocation2 + $0x8] sm:$0xff]
    %v42 = vpack.c.bf16 %v41, %v40
    %v43 = vld [vmem:[#allocation4] sm:$0xf]
    %v44 = vld [vmem:[#allocation4 + $0x4] sm:$0xf]
    %v45 = vld [vmem:[#allocation4 + $0x8] sm:$0xf]
    %v46 = vld [vmem:[#allocation4 + $0xc] sm:$0xf]
    %v51 = vunpack.c.l.b16 %v43
    %v52 = vunpack.c.l.b16 %v44
    %v53 = vunpack.c.l.b16 %v45
    %v54 = vunpack.c.l.b16 %v46
    %v55 = vpack.c.b16 %v52, %v51
    %v56 = vpack.c.b16 %v54, %v53
    %vm59 = vcmask 261120
    %v61 = vsel %vm59, %v42, 0
    %63 = vmatprep.subr.bf16.mxu0 0
    %64 = vmatpush1.bf16.msra.mxu0 %v55
    %65 = vmatprep.subr.bf16.mxu0 0
    %66 = vmatpush1.bf16.msra.mxu0 %v56
    %67 = vmatprep.subr.bf16.mxu0 0
    %68 = vmatpush1.bf16.msra.mxu0 0
    %69 = vmatprep.subr.bf16.mxu0 0
    %70 = vmatpush1.bf16.msra.mxu0 0
    %71 = vmatprep.subr.bf16.mxu0 0
    %72 = vmatpush1.bf16.msra.mxu0 0
    %73 = vmatprep.subr.bf16.mxu0 0
    %74 = vmatpush1.bf16.msra.mxu0 0
    %75 = vmatprep.subr.bf16.mxu0 0
    %76 = vmatpush1.bf16.msra.mxu0 0
    %77 = vmatprep.subr.bf16.mxu0 0
    %78 = vmatpush1.bf16.msra.mxu0 0
    %79 = vmatprep.subr.bf16.mxu0 0
    %80 = vmatpush1.bf16.msra.mxu0 0
    %81 = vmatprep.subr.bf16.mxu0 0
    %82 = vmatpush1.bf16.msra.mxu0 0
    %83 = vmatprep.subr.bf16.mxu0 0
    %84 = vmatpush1.bf16.msra.mxu0 0
    %85 = vmatprep.subr.bf16.mxu0 0
    %86 = vmatpush1.bf16.msra.mxu0 0
    %87 = vmatprep.subr.bf16.mxu0 0
    %88 = vmatpush1.bf16.msra.mxu0 0
    %89 = vmatprep.subr.bf16.mxu0 0
    %90 = vmatpush1.bf16.msra.mxu0 0
    %91 = vmatprep.subr.bf16.mxu0 0
    %92 = vmatpush1.bf16.msra.mxu0 0
    %93 = vmatprep.subr.bf16.mxu0 0
    %94 = vmatpush1.bf16.msra.mxu0 0
    %95 = vmatprep.mubr.bf16.mxu0 0
    %96 = vmatmul.mubr.bf16.gmra.mrb[0].mxu0 %v61
    %v97 = vpop.f32.mrb[0].mxu0
    %v98 = vadd.f32 0.0, %v97
    %v99 = vpop.f32.mrb[0].mxu0
    %v100 = vpop.f32.mrb[0].mxu0
    %v101 = vadd.f32 0.0, %v100
    %v102 = vpop.f32.mrb[0].mxu0
    %103 = vdwg.mxu0
    %104 = vst [vmem:[%s2] sm:$0xff] %v98
    %105 = vst [vmem:[%s2 + $0x8] sm:$0xff] %v101
    // Predicated region
    $region18: #{spiking_fc_forward.1} parent=1 // pred_check
      _
    $region19: #{spiking_fc_forward.1} parent=1 // pred_check_branch
      %107 = sbr.rel (0) target = $region21
    $region20: #{spiking_fc_forward.1} parent=1 // pred_region
      _
    $region21: #{spiking_fc_forward.1} parent=1 // pred_fallthru
      _
    // Predicated region
    $region22: #{spiking_fc_forward.1} parent=1 // pred_check
      _
    $region23: #{spiking_fc_forward.1} parent=1 // pred_check_branch
      %109 = sbr.rel (0) target = $region25
    $region24: #{spiking_fc_forward.1} parent=1 // pred_region
      _
    $region25: #{spiking_fc_forward.1} parent=1 // pred_fallthru
      _
    %110 = vsyncpa [#allocation3], 1
    %111 = vsyncpa [#allocation5], 1

</llo_original>
